<compile_context>
chip_gen: v7x
topology: tpu7x:2x2x1
jax: 0.10.0
libtpu: 0.0.40
codegen_flags: <defaults>
</compile_context>

<pallas_src>
import jax
import jax.numpy as jnp
from jax.experimental import pallas as pl
from jax.experimental.pallas import tpu as pltpu


# --------------------------------------------------------------------------- #
# Kernel
# --------------------------------------------------------------------------- #
def _encoder_kernel(x_ref, w1_ref, b1_ref, w2_ref, b2_ref, o_ref):
    # Cast the VMEM block to the compute dtype (no-op on the f32 path); HBM
    # traffic stays in x's native dtype.
    x = x_ref[...].astype(w1_ref.dtype)
    # Layer 1 on the MXU with f32 accumulation.
    h = jnp.dot(x, w1_ref[...], preferred_element_type=jnp.float32)
    # Bias add + ReLU in f32 on the VPU (b1 is (1, pack*hidden) -> broadcast).
    h = jnp.maximum(h + b1_ref[...], 0.0)
    # Layer 2: feed the MXU in the compute dtype, accumulate in f32.
    out = jnp.dot(h.astype(w2_ref.dtype), w2_ref[...],
                  preferred_element_type=jnp.float32)
    o_ref[...] = (out + b2_ref[...]).astype(o_ref.dtype)


# --------------------------------------------------------------------------- #
# Packing helpers (hoisted out of the hot path)
# --------------------------------------------------------------------------- #
def _cdiv(a, b):
    return -(-a // b)


def _round_up(a, b):
    return _cdiv(a, b) * b


def _pick_pack(enc, compute_dtype):
    """Rows folded per packed row so the output row is lane-dense (>=128)."""
    if jnp.dtype(compute_dtype) == jnp.float32:
        # f32 MXU matmul is multi-pass (esp. v5e): cap the kron FLOP inflation.
        return max(1, min(8, 128 // enc))
    return max(1, 128 // enc)


def _pack_params(w1, b1, w2, b2, pack, compute_dtype):
    """Block-diagonal (kron) weights + tiled biases for the packed layout.

    Mathematically identical to applying (w1, b1, w2, b2) per row; the zero
    blocks are tiny and VMEM-resident so they add no per-step HBM traffic.
    """
    cdt = jnp.dtype(compute_dtype)
    hidden = w1.shape[1]
    enc = w2.shape[1]
    eye = jnp.eye(pack, dtype=cdt)
    w1p = jnp.kron(eye, jnp.asarray(w1, cdt))                 # (pack*in, pack*hidden)
    w2p = jnp.kron(eye, jnp.asarray(w2, cdt))                 # (pack*hidden, pack*enc)
    b1p = jnp.tile(jnp.asarray(b1, jnp.float32).reshape(1, hidden), (1, pack))
    b2p = jnp.tile(jnp.asarray(b2, jnp.float32).reshape(1, enc), (1, pack))
    return w1p, b1p, w2p, b2p


# --------------------------------------------------------------------------- #
# pallas_call wrapper
# --------------------------------------------------------------------------- #
def _encode_packed(x, w1p, b1p, w2p, b2p, *, pack, input_dim, hidden, enc,
                   block_rows=None, vmem_limit_bytes=48 << 20):
    B = x.shape[0]
    out_dtype = x.dtype
    x_itemsize = jnp.dtype(x.dtype).itemsize

    # ---- fold `pack` batch rows into one lane-dense packed row ------------- #
    b_pad = _round_up(B, pack)
    if b_pad != B:
        # Fallback (small / ragged batches, e.g. the demo's B=8).  For large
        # batches keep B % pack == 0 so this stays a free row-major reshape
        # with no extra HBM pass.
        x = jnp.pad(x, ((0, b_pad - B), (0, 0)))
    rows = b_pad // pack
    xp = x.reshape(rows, pack * input_dim)        # row-major => free view

    # ---- batch tiling: packed rows per grid step ---------------------------- #
    if block_rows is None:
        # ~8 MiB of x per grid step (=> step overhead ~0.35us is <10% of the
        # HBM time per step on v5e/v6e/v7x).  65536 rows for in=32 / f32.
        block_rows = max(4 * pack, (8 << 20) // max(1, input_dim * x_itemsize))
    tbp_target = max(16, (block_rows // pack // 16) * 16)

    MIN_TBP = 512  # keep each step's x slab >= ~1 MiB before splitting further
    if rows >= 4 * MIN_TBP:
        # Prefer >=4 grid steps so dimension_semantics=("parallel",) can shard
        # the batch axis across both TensorCores on v7x.
        n_steps = max(4, _cdiv(rows, tbp_target))
        tbp = min(tbp_target, max(MIN_TBP, _round_up(_cdiv(rows, n_steps), 16)))
    else:
        # Small batch: one (or few) full/edge blocks; a block equal to the full
        # row extent is always a legal block shape.
        tbp = min(rows, tbp_target)
    grid = _cdiv(rows, tbp)

    # ---- advisory cost hint (includes the pack^2 kron FLOP inflation) ------- #
    flops = 2 * rows * ((pack * input_dim) * (pack * hidden)
                        + (pack * hidden) * (pack * enc))
    bytes_accessed = int(
        xp.size * x_itemsize
        + w1p.size * jnp.dtype(w1p.dtype).itemsize
        + w2p.size * jnp.dtype(w2p.dtype).itemsize
        + b1p.size * 4 + b2p.size * 4
        + rows * pack * enc * jnp.dtype(out_dtype).itemsize)
    cost = pl.CostEstimate(flops=int(flops), transcendentals=0,
                           bytes_accessed=bytes_accessed)

    # NOTE: the four weight/bias inputs are grid-invariant (constant index_map)
    # and tiny (<0.7 MiB even double-buffered), so they are DMA'd once and stay
    # VMEM resident.  If input_dim grows large, single-buffer them with
    # pipeline_mode=pl.Buffered(1) to free VMEM for bigger x/out blocks.
    out_p = pl.pallas_call(
        _encoder_kernel,
        out_shape=jax.ShapeDtypeStruct((rows, pack * enc), out_dtype),
        grid_spec=pl.GridSpec(
            grid=(grid,),
            in_specs=[
                pl.BlockSpec((tbp, pack * input_dim), lambda i: (i, 0)),
                pl.BlockSpec(w1p.shape, lambda i: (0, 0)),
                pl.BlockSpec(b1p.shape, lambda i: (0, 0)),
                pl.BlockSpec(w2p.shape, lambda i: (0, 0)),
                pl.BlockSpec(b2p.shape, lambda i: (0, 0)),
            ],
            out_specs=pl.BlockSpec((tbp, pack * enc), lambda i: (i, 0)),
        ),
        compiler_params=pltpu.CompilerParams(
            dimension_semantics=("parallel",),        # batch axis -> both TCs
            vmem_limit_bytes=vmem_limit_bytes),       # fits v7x's 64 MiB VMEM
        cost_estimate=cost,
    )(xp, w1p, b1p, w2p, b2p)

    return out_p.reshape(b_pad, enc)[:B]


# --------------------------------------------------------------------------- #
# Public API
# --------------------------------------------------------------------------- #
def make_simple_state_encoder(w1, b1, w2, b2, *, compute_dtype=jnp.bfloat16,
                              block_rows=None, vmem_limit_bytes=48 << 20):
    """Pack the weights once and return a jitted `encode(x) -> (B, enc)`.

    compute_dtype=bf16 (default): MXU inputs are cast in-kernel, accumulation
    and bias/ReLU stay f32.  compute_dtype=f32 uses f32 MXU inputs with a
    smaller packing factor (see _pick_pack).
    """
    input_dim, hidden = w1.shape
    enc = w2.shape[1]
    pack = _pick_pack(enc, compute_dtype)
    w1p, b1p, w2p, b2p = _pack_params(w1, b1, w2, b2, pack, compute_dtype)

    def encode(x):
        return _encode_packed(x, w1p, b1p, w2p, b2p, pack=pack,
                              input_dim=input_dim, hidden=hidden, enc=enc,
                              block_rows=block_rows,
                              vmem_limit_bytes=vmem_limit_bytes)

    return jax.jit(encode)


def simple_state_encoder(x, w1, b1, w2, b2, *, compute_dtype=jnp.bfloat16,
                         block_rows=None, vmem_limit_bytes=48 << 20):
    """One-shot convenience wrapper.  For repeated calls prefer
    make_simple_state_encoder, which hoists the weight packing out of the
    per-call path."""
    input_dim, hidden = w1.shape
    enc = w2.shape[1]
    pack = _pick_pack(enc, compute_dtype)
    w1p, b1p, w2p, b2p = _pack_params(w1, b1, w2, b2, pack, compute_dtype)
    return _encode_packed(x, w1p, b1p, w2p, b2p, pack=pack,
                          input_dim=input_dim, hidden=hidden, enc=enc,
                          block_rows=block_rows,
                          vmem_limit_bytes=vmem_limit_bytes)


def init_params(key, input_dim, encoding_dim=8, dtype=jnp.float32):
    """Deterministic PyTorch-style init: U(-1/sqrt(fan_in), 1/sqrt(fan_in))."""
    hidden = encoding_dim * 2
    k1, k2, k3, k4 = jax.random.split(key, 4)
    lim1 = 1.0 / (input_dim ** 0.5)
    lim2 = 1.0 / (hidden ** 0.5)
    w1 = jax.random.uniform(k1, (input_dim, hidden), dtype, -lim1, lim1)
    b1 = jax.random.uniform(k2, (hidden,), dtype, -lim1, lim1)
    w2 = jax.random.uniform(k3, (hidden, encoding_dim), dtype, -lim2, lim2)
    b2 = jax.random.uniform(k4, (encoding_dim,), dtype, -lim2, lim2)
    return w1, b1, w2, b2


if __name__ == "__main__":
    key = jax.random.PRNGKey(0)
    batch, input_dim, encoding_dim = 8, 32, 8

    k_x, k_p = jax.random.split(key)
    x = jax.random.normal(k_x, (batch, input_dim), jnp.float32)
    w1, b1, w2, b2 = init_params(k_p, input_dim, encoding_dim)

    # Pure-JAX reference of the forward semantics.
    ref = jnp.maximum(x @ w1 + b1[None, :], 0.0) @ w2 + b2[None, :]

    # Default path: weights packed once, bf16 MXU inputs (in-kernel cast),
    # f32 accumulation.
    encode = make_simple_state_encoder(w1, b1, w2, b2)
    out = jax.block_until_ready(encode(x))
    assert out.shape == (batch, encoding_dim)
    assert jnp.allclose(out, ref, atol=5e-2, rtol=5e-2)

    # f32 compute path (tighter tolerance).
    out_f32 = jax.block_until_ready(
        simple_state_encoder(x, w1, b1, w2, b2, compute_dtype=jnp.float32))
    assert out_f32.shape == (batch, encoding_dim)
    assert jnp.allclose(out_f32, ref, atol=1e-4, rtol=1e-4)

    print("KERNEL_OK")
</pallas_src>

<mosaic_0001>
module attributes {stable_mosaic.version = 11 : i64} {
  func.func @_encoder_kernel(%arg0: i32, %arg1: memref<1x512xf32, #tpu.memory_space<vmem>>, %arg2: memref<512x256xbf16, #tpu.memory_space<vmem>>, %arg3: memref<1x256xf32, #tpu.memory_space<vmem>>, %arg4: memref<256x128xbf16, #tpu.memory_space<vmem>>, %arg5: memref<1x128xf32, #tpu.memory_space<vmem>>, %arg6: memref<1x128xf32, #tpu.memory_space<vmem>>) attributes {dimension_semantics = [#tpu.dimension_semantics<parallel>], iteration_bounds = array<i64: 1>, scalar_prefetch = 0 : i64, scratch_operands = 0 : i64, tpu.core_type = #tpu.core_type<tc>, window_params = [{transform_indices = @transform_0, window_bounds = array<i64: 1, 512>}, {pipeline_mode = #tpu.pipeline_mode<synchronous>, transform_indices = @transform_1, window_bounds = array<i64: 512, 256>}, {pipeline_mode = #tpu.pipeline_mode<synchronous>, transform_indices = @transform_2, window_bounds = array<i64: 1, 256>}, {pipeline_mode = #tpu.pipeline_mode<synchronous>, transform_indices = @transform_3, window_bounds = array<i64: 256, 128>}, {pipeline_mode = #tpu.pipeline_mode<synchronous>, transform_indices = @transform_4, window_bounds = array<i64: 1, 128>}, {transform_indices = @transform_5, window_bounds = array<i64: 1, 128>}]} {
    %c0 = arith.constant 0 : index
    %c0_0 = arith.constant 0 : index
    %0 = vector.load %arg1[%c0, %c0_0] : memref<1x512xf32, #tpu.memory_space<vmem>>, vector<1x512xf32>
    %1 = arith.truncf %0 : vector<1x512xf32> to vector<1x512xbf16>
    %c0_1 = arith.constant 0 : index
    %c0_2 = arith.constant 0 : index
    %2 = vector.load %arg2[%c0_1, %c0_2] : memref<512x256xbf16, #tpu.memory_space<vmem>>, vector<512x256xbf16>
    %cst = arith.constant dense<0.000000e+00> : vector<1x256xf32>
    %3 = tpu.matmul %1, %2, %cst {dimension_numbers = #tpu.dot_dimension_numbers<[1], [0], [0], [1], [0, 0, 1, 1], [], []>} : vector<1x512xbf16>, vector<512x256xbf16>, vector<1x256xf32> -> vector<1x256xf32>
    %c0_3 = arith.constant 0 : index
    %c0_4 = arith.constant 0 : index
    %4 = vector.load %arg3[%c0_3, %c0_4] : memref<1x256xf32, #tpu.memory_space<vmem>>, vector<1x256xf32>
    %5 = arith.addf %3, %4 : vector<1x256xf32>
    %cst_5 = arith.constant 0.000000e+00 : f32
    %6 = vector.broadcast %cst_5 : f32 to vector<1x256xf32>
    %7 = arith.maximumf %5, %6 : vector<1x256xf32>
    %8 = arith.truncf %7 : vector<1x256xf32> to vector<1x256xbf16>
    %c0_6 = arith.constant 0 : index
    %c0_7 = arith.constant 0 : index
    %9 = vector.load %arg4[%c0_6, %c0_7] : memref<256x128xbf16, #tpu.memory_space<vmem>>, vector<256x128xbf16>
    %cst_8 = arith.constant dense<0.000000e+00> : vector<1x128xf32>
    %10 = tpu.matmul %8, %9, %cst_8 {dimension_numbers = #tpu.dot_dimension_numbers<[1], [0], [0], [1], [0, 0, 1, 1], [], []>} : vector<1x256xbf16>, vector<256x128xbf16>, vector<1x128xf32> -> vector<1x128xf32>
    %c0_9 = arith.constant 0 : index
    %c0_10 = arith.constant 0 : index
    %11 = vector.load %arg5[%c0_9, %c0_10] : memref<1x128xf32, #tpu.memory_space<vmem>>, vector<1x128xf32>
    %12 = arith.addf %10, %11 : vector<1x128xf32>
    %c0_11 = arith.constant 0 : index
    %c0_12 = arith.constant 0 : index
    %13 = vector.load %arg6[%c0_11, %c0_12] : memref<1x128xf32, #tpu.memory_space<vmem>>, vector<1x128xf32>
    tpu.vector_store %arg6[%c0_11, %c0_12], %12 {strides = array<i32>} : memref<1x128xf32, #tpu.memory_space<vmem>>, vector<1x128xf32>,
    return
  }
  func.func @transform_0(%arg0: i32) -> (i32, i32) {
    %c0_i32 = arith.constant 0 : i32
    %c0_i32_0 = arith.constant 0 : i32
    return %arg0, %c0_i32 : i32, i32
  }
  func.func @transform_1(%arg0: i32) -> (i32, i32) {
    %c0_i32 = arith.constant 0 : i32
    %c0_i32_0 = arith.constant 0 : i32
    %c0_i32_1 = arith.constant 0 : i32
    return %c0_i32, %c0_i32_0 : i32, i32
  }
  func.func @transform_2(%arg0: i32) -> (i32, i32) {
    %c0_i32 = arith.constant 0 : i32
    %c0_i32_0 = arith.constant 0 : i32
    %c0_i32_1 = arith.constant 0 : i32
    return %c0_i32, %c0_i32_0 : i32, i32
  }
  func.func @transform_3(%arg0: i32) -> (i32, i32) {
    %c0_i32 = arith.constant 0 : i32
    %c0_i32_0 = arith.constant 0 : i32
    %c0_i32_1 = arith.constant 0 : i32
    return %c0_i32, %c0_i32_0 : i32, i32
  }
  func.func @transform_4(%arg0: i32) -> (i32, i32) {
    %c0_i32 = arith.constant 0 : i32
    %c0_i32_0 = arith.constant 0 : i32
    %c0_i32_1 = arith.constant 0 : i32
    return %c0_i32, %c0_i32_0 : i32, i32
  }
  func.func @transform_5(%arg0: i32) -> (i32, i32) {
    %c0_i32 = arith.constant 0 : i32
    %c0_i32_0 = arith.constant 0 : i32
    return %arg0, %c0_i32 : i32, i32
  }
}

</mosaic_0001>

<llo_original>
// kernel: encode.1
$region0: #{encode.1}
  #allocation0 [shape = 'u32[]', space=smem, size = 0x4, offset = 0x4, fixed_abs, tag = 'smem constant byte address 0x4 - core index']
  #allocation1 [shape = 'u32[144,128]{1,0:T(1,128)}', space=vmem, size = 0x12000, scoped, tag = 'internal scratch']
  %s0 = inlined_call_operand.vmem [shape: f32[1,512], index: 0, kind: input, shape index: {}]
  %s1 = inlined_call_operand.vmem [shape: bf16[512,256], index: 1, kind: input, shape index: {}]
  %s2 = inlined_call_operand.vmem [shape: f32[1,256], index: 2, kind: input, shape index: {}]
  %s3 = inlined_call_operand.vmem [shape: bf16[256,128], index: 3, kind: input, shape index: {}]
  %s4 = inlined_call_operand.vmem [shape: f32[1,128], index: 4, kind: input, shape index: {}]
  %s5 = inlined_call_operand.vmem [shape: f32[1,128], index: 5, kind: output, shape index: {}]
  %s6 = sld [smem:[#allocation0]]
  $region30: #{encode.1} parent=0
    _
  %s8 = ssub.s32 1, %s6
  %s9 = scalar_select 0, %s8, %s6
  // Predicated region
  $region2: #{encode.1} parent=0 // pred_check
    _
  $region3: #{encode.1} parent=0 // pred_check_branch
    %11 = sbr.rel (0) target = $region5
  $region4: #{encode.1} parent=0 // pred_region
    _
  $region5: #{encode.1} parent=0 // pred_fallthru
    _
  // Predicated region
  $region6: #{encode.1} parent=0 // pred_check
    _
  $region7: #{encode.1} parent=0 // pred_check_branch
    %13 = sbr.rel (0) target = $region9
  $region8: #{encode.1} parent=0 // pred_region
    _
  $region9: #{encode.1} parent=0 // pred_fallthru
    _
  // Predicated region
  $region10: #{encode.1} parent=0 // pred_check
    _
  $region11: #{encode.1} parent=0 // pred_check_branch
    %15 = sbr.rel (0) target = $region13
  $region12: #{encode.1} parent=0 // pred_region
    _
  $region13: #{encode.1} parent=0 // pred_fallthru
    _
  // Predicated region
  $region14: #{encode.1} parent=0 // pred_check
    _
  $region15: #{encode.1} parent=0 // pred_check_branch
    %17 = sbr.rel (0) target = $region17
  $region16: #{encode.1} parent=0 // pred_region
    _
  $region17: #{encode.1} parent=0 // pred_fallthru
    _
  // Predicated region
  $region18: #{encode.1} parent=0 // pred_check
    _
  $region19: #{encode.1} parent=0 // pred_check_branch
    %19 = sbr.rel (0) target = $region21
  $region20: #{encode.1} parent=0 // pred_region
    _
  $region21: #{encode.1} parent=0 // pred_fallthru
    _
  %v21 = vld [vmem:[%s0] sm:$0xf]
  %v23 = vlaneseq
  %v24 = vshrl.u32 %v23, 7
  %v25 = vsub.s32 0, %v24
  %v26 = vrot.slane %v21, %v25
  %v27 = vlaneseq
  %v28 = vshrl.u32 %v27, 7
  %v29 = vsub.s32 1, %v28
  %v30 = vrot.slane %v21, %v29
  %v31 = vlaneseq
  %v32 = vshrl.u32 %v31, 7
  %v33 = vsub.s32 2, %v32
  %v34 = vrot.slane %v21, %v33
  %v35 = vlaneseq
  %v36 = vshrl.u32 %v35, 7
  %v37 = vsub.s32 3, %v36
  %v38 = vrot.slane %v21, %v37
  %v43 = vpack.c.bf16 %v26, %v26
  %v44 = vpack.c.bf16 %v30, %v30
  %v45 = vpack.c.bf16 %v34, %v34
  %v46 = vpack.c.bf16 %v38, %v38
  %v47 = vld [vmem:[%s1] sm:$0xff]
  %v48 = vld [vmem:[%s1 + $0x8] sm:$0xff]
  %v49 = vld [vmem:[%s1 + $0x10] sm:$0xff]
  %v50 = vld [vmem:[%s1 + $0x18] sm:$0xff]
  %v51 = vld [vmem:[%s1 + $0x20] sm:$0xff]
  %v52 = vld [vmem:[%s1 + $0x28] sm:$0xff]
  %v53 = vld [vmem:[%s1 + $0x30] sm:$0xff]
  %v54 = vld [vmem:[%s1 + $0x38] sm:$0xff]
  %v55 = vld [vmem:[%s1 + $0x40] sm:$0xff]
  %v56 = vld [vmem:[%s1 + $0x48] sm:$0xff]
  %v57 = vld [vmem:[%s1 + $0x50] sm:$0xff]
  %v58 = vld [vmem:[%s1 + $0x58] sm:$0xff]
  %v59 = vld [vmem:[%s1 + $0x60] sm:$0xff]
  %v60 = vld [vmem:[%s1 + $0x68] sm:$0xff]
  %v61 = vld [vmem:[%s1 + $0x70] sm:$0xff]
  %v62 = vld [vmem:[%s1 + $0x78] sm:$0xff]
  %v63 = vld [vmem:[%s1 + $0x80] sm:$0xff]
  %v64 = vld [vmem:[%s1 + $0x88] sm:$0xff]
  %v65 = vld [vmem:[%s1 + $0x90] sm:$0xff]
  %v66 = vld [vmem:[%s1 + $0x98] sm:$0xff]
  %v67 = vld [vmem:[%s1 + $0xa0] sm:$0xff]
  %v68 = vld [vmem:[%s1 + $0xa8] sm:$0xff]
  %v69 = vld [vmem:[%s1 + $0xb0] sm:$0xff]
  %v70 = vld [vmem:[%s1 + $0xb8] sm:$0xff]
  %v71 = vld [vmem:[%s1 + $0xc0] sm:$0xff]
  %v72 = vld [vmem:[%s1 + $0xc8] sm:$0xff]
  %v73 = vld [vmem:[%s1 + $0xd0] sm:$0xff]
  %v74 = vld [vmem:[%s1 + $0xd8] sm:$0xff]
  %v75 = vld [vmem:[%s1 + $0xe0] sm:$0xff]
  %v76 = vld [vmem:[%s1 + $0xe8] sm:$0xff]
  %v77 = vld [vmem:[%s1 + $0xf0] sm:$0xff]
  %v78 = vld [vmem:[%s1 + $0xf8] sm:$0xff]
  %v79 = vld [vmem:[%s1 + $0x100] sm:$0xff]
  %v80 = vld [vmem:[%s1 + $0x108] sm:$0xff]
  %v81 = vld [vmem:[%s1 + $0x110] sm:$0xff]
  %v82 = vld [vmem:[%s1 + $0x118] sm:$0xff]
  %v83 = vld [vmem:[%s1 + $0x120] sm:$0xff]
  %v84 = vld [vmem:[%s1 + $0x128] sm:$0xff]
  %v85 = vld [vmem:[%s1 + $0x130] sm:$0xff]
  %v86 = vld [vmem:[%s1 + $0x138] sm:$0xff]
  %v87 = vld [vmem:[%s1 + $0x140] sm:$0xff]
  %v88 = vld [vmem:[%s1 + $0x148] sm:$0xff]
  %v89 = vld [vmem:[%s1 + $0x150] sm:$0xff]
  %v90 = vld [vmem:[%s1 + $0x158] sm:$0xff]
  %v91 = vld [vmem:[%s1 + $0x160] sm:$0xff]
  %v92 = vld [vmem:[%s1 + $0x168] sm:$0xff]
  %v93 = vld [vmem:[%s1 + $0x170] sm:$0xff]
  %v94 = vld [vmem:[%s1 + $0x178] sm:$0xff]
  %v95 = vld [vmem:[%s1 + $0x180] sm:$0xff]
  %v96 = vld [vmem:[%s1 + $0x188] sm:$0xff]
  %v97 = vld [vmem:[%s1 + $0x190] sm:$0xff]
  %v98 = vld [vmem:[%s1 + $0x198] sm:$0xff]
  %v99 = vld [vmem:[%s1 + $0x1a0] sm:$0xff]
  %v100 = vld [vmem:[%s1 + $0x1a8] sm:$0xff]
  %v101 = vld [vmem:[%s1 + $0x1b0] sm:$0xff]
  %v102 = vld [vmem:[%s1 + $0x1b8] sm:$0xff]
  %v103 = vld [vmem:[%s1 + $0x1c0] sm:$0xff]
  %v104 = vld [vmem:[%s1 + $0x1c8] sm:$0xff]
  %v105 = vld [vmem:[%s1 + $0x1d0] sm:$0xff]
  %v106 = vld [vmem:[%s1 + $0x1d8] sm:$0xff]
  %v107 = vld [vmem:[%s1 + $0x1e0] sm:$0xff]
  %v108 = vld [vmem:[%s1 + $0x1e8] sm:$0xff]
  %v109 = vld [vmem:[%s1 + $0x1f0] sm:$0xff]
  %v110 = vld [vmem:[%s1 + $0x1f8] sm:$0xff]
  %v111 = vld [vmem:[%s2] sm:$0x3]
  %v176 = vunpack.c.l.b16 %v47
  %v177 = vunpack.c.h.b16 %v47
  %v178 = vunpack.c.l.b16 %v48
  %v179 = vunpack.c.h.b16 %v48
  %v180 = vunpack.c.l.b16 %v49
  %v181 = vunpack.c.h.b16 %v49
  %v182 = vunpack.c.l.b16 %v50
  %v183 = vunpack.c.h.b16 %v50
  %v184 = vunpack.c.l.b16 %v51
  %v185 = vunpack.c.h.b16 %v51
  %v186 = vunpack.c.l.b16 %v52
  %v187 = vunpack.c.h.b16 %v52
  %v188 = vunpack.c.l.b16 %v53
  %v189 = vunpack.c.h.b16 %v53
  %v190 = vunpack.c.l.b16 %v54
  %v191 = vunpack.c.h.b16 %v54
  %v192 = vunpack.c.l.b16 %v55
  %v193 = vunpack.c.h.b16 %v55
  %v194 = vunpack.c.l.b16 %v56
  %v195 = vunpack.c.h.b16 %v56
  %v196 = vunpack.c.l.b16 %v57
  %v197 = vunpack.c.h.b16 %v57
  %v198 = vunpack.c.l.b16 %v58
  %v199 = vunpack.c.h.b16 %v58
  %v200 = vunpack.c.l.b16 %v59
  %v201 = vunpack.c.h.b16 %v59
  %v202 = vunpack.c.l.b16 %v60
  %v203 = vunpack.c.h.b16 %v60
  %v204 = vunpack.c.l.b16 %v61
  %v205 = vunpack.c.h.b16 %v61
  %v206 = vunpack.c.l.b16 %v62
  %v207 = vunpack.c.h.b16 %v62
  %v208 = vunpack.c.l.b16 %v63
  %v209 = vunpack.c.h.b16 %v63
  %v210 = vunpack.c.l.b16 %v64
  %v211 = vunpack.c.h.b16 %v64
  %v212 = vunpack.c.l.b16 %v65
  %v213 = vunpack.c.h.b16 %v65
  %v214 = vunpack.c.l.b16 %v66
  %v215 = vunpack.c.h.b16 %v66
  %v216 = vunpack.c.l.b16 %v67
  %v217 = vunpack.c.h.b16 %v67
  %v218 = vunpack.c.l.b16 %v68
  %v219 = vunpack.c.h.b16 %v68
  %v220 = vunpack.c.l.b16 %v69
  %v221 = vunpack.c.h.b16 %v69
  %v222 = vunpack.c.l.b16 %v70
  %v223 = vunpack.c.h.b16 %v70
  %v224 = vunpack.c.l.b16 %v71
  %v225 = vunpack.c.h.b16 %v71
  %v226 = vunpack.c.l.b16 %v72
  %v227 = vunpack.c.h.b16 %v72
  %v228 = vunpack.c.l.b16 %v73
  %v229 = vunpack.c.h.b16 %v73
  %v230 = vunpack.c.l.b16 %v74
  %v231 = vunpack.c.h.b16 %v74
  %v232 = vunpack.c.l.b16 %v75
  %v233 = vunpack.c.h.b16 %v75
  %v234 = vunpack.c.l.b16 %v76
  %v235 = vunpack.c.h.b16 %v76
  %v236 = vunpack.c.l.b16 %v77
  %v237 = vunpack.c.h.b16 %v77
  %v238 = vunpack.c.l.b16 %v78
  %v239 = vunpack.c.h.b16 %v78
  %v240 = vunpack.c.l.b16 %v79
  %v241 = vunpack.c.h.b16 %v79
  %v242 = vunpack.c.l.b16 %v80
  %v243 = vunpack.c.h.b16 %v80
  %v244 = vunpack.c.l.b16 %v81
  %v245 = vunpack.c.h.b16 %v81
  %v246 = vunpack.c.l.b16 %v82
  %v247 = vunpack.c.h.b16 %v82
  %v248 = vunpack.c.l.b16 %v83
  %v249 = vunpack.c.h.b16 %v83
  %v250 = vunpack.c.l.b16 %v84
  %v251 = vunpack.c.h.b16 %v84
  %v252 = vunpack.c.l.b16 %v85
  %v253 = vunpack.c.h.b16 %v85
  %v254 = vunpack.c.l.b16 %v86
  %v255 = vunpack.c.h.b16 %v86
  %v256 = vunpack.c.l.b16 %v87
  %v257 = vunpack.c.h.b16 %v87
  %v258 = vunpack.c.l.b16 %v88
  %v259 = vunpack.c.h.b16 %v88
  %v260 = vunpack.c.l.b16 %v89
  %v261 = vunpack.c.h.b16 %v89
  %v262 = vunpack.c.l.b16 %v90
  %v263 = vunpack.c.h.b16 %v90
  %v264 = vunpack.c.l.b16 %v91
  %v265 = vunpack.c.h.b16 %v91
  %v266 = vunpack.c.l.b16 %v92
  %v267 = vunpack.c.h.b16 %v92
  %v268 = vunpack.c.l.b16 %v93
  %v269 = vunpack.c.h.b16 %v93
  %v270 = vunpack.c.l.b16 %v94
  %v271 = vunpack.c.h.b16 %v94
  %v272 = vunpack.c.l.b16 %v95
  %v273 = vunpack.c.h.b16 %v95
  %v274 = vunpack.c.l.b16 %v96
  %v275 = vunpack.c.h.b16 %v96
  %v276 = vunpack.c.l.b16 %v97
  %v277 = vunpack.c.h.b16 %v97
  %v278 = vunpack.c.l.b16 %v98
  %v279 = vunpack.c.h.b16 %v98
  %v280 = vunpack.c.l.b16 %v99
  %v281 = vunpack.c.h.b16 %v99
  %v282 = vunpack.c.l.b16 %v100
  %v283 = vunpack.c.h.b16 %v100
  %v284 = vunpack.c.l.b16 %v101
  %v285 = vunpack.c.h.b16 %v101
  %v286 = vunpack.c.l.b16 %v102
  %v287 = vunpack.c.h.b16 %v102
  %v288 = vunpack.c.l.b16 %v103
  %v289 = vunpack.c.h.b16 %v103
  %v290 = vunpack.c.l.b16 %v104
  %v291 = vunpack.c.h.b16 %v104
  %v292 = vunpack.c.l.b16 %v105
  %v293 = vunpack.c.h.b16 %v105
  %v294 = vunpack.c.l.b16 %v106
  %v295 = vunpack.c.h.b16 %v106
  %v296 = vunpack.c.l.b16 %v107
  %v297 = vunpack.c.h.b16 %v107
  %v298 = vunpack.c.l.b16 %v108
  %v299 = vunpack.c.h.b16 %v108
  %v300 = vunpack.c.l.b16 %v109
  %v301 = vunpack.c.h.b16 %v109
  %v302 = vunpack.c.l.b16 %v110
  %v303 = vunpack.c.h.b16 %v110
  %v304 = vpack.c.b16 %v178, %v176
  %v305 = vpack.c.b16 %v179, %v177
  %v306 = vpack.c.b16 %v182, %v180
  %v307 = vpack.c.b16 %v183, %v181
  %v308 = vpack.c.b16 %v186, %v184
  %v309 = vpack.c.b16 %v187, %v185
  %v310 = vpack.c.b16 %v190, %v188
  %v311 = vpack.c.b16 %v191, %v189
  %v312 = vpack.c.b16 %v194, %v192
  %v313 = vpack.c.b16 %v195, %v193
  %v314 = vpack.c.b16 %v198, %v196
  %v315 = vpack.c.b16 %v199, %v197
  %v316 = vpack.c.b16 %v202, %v200
  %v317 = vpack.c.b16 %v203, %v201
  %v318 = vpack.c.b16 %v206, %v204
  %v319 = vpack.c.b16 %v207, %v205
  %v320 = vpack.c.b16 %v210, %v208
  %v321 = vpack.c.b16 %v211, %v209
  %v322 = vpack.c.b16 %v214, %v212
  %v323 = vpack.c.b16 %v215, %v213
  %v324 = vpack.c.b16 %v218, %v216
  %v325 = vpack.c.b16 %v219, %v217
  %v326 = vpack.c.b16 %v222, %v220
  %v327 = vpack.c.b16 %v223, %v221
  %v328 = vpack.c.b16 %v226, %v224
  %v329 = vpack.c.b16 %v227, %v225
  %v330 = vpack.c.b16 %v230, %v228
  %v331 = vpack.c.b16 %v231, %v229
  %v332 = vpack.c.b16 %v234, %v232
  %v333 = vpack.c.b16 %v235, %v233
  %v334 = vpack.c.b16 %v238, %v236
  %v335 = vpack.c.b16 %v239, %v237
  %v336 = vpack.c.b16 %v242, %v240
  %v337 = vpack.c.b16 %v243, %v241
  %v338 = vpack.c.b16 %v246, %v244
  %v339 = vpack.c.b16 %v247, %v245
  %v340 = vpack.c.b16 %v250, %v248
  %v341 = vpack.c.b16 %v251, %v249
  %v342 = vpack.c.b16 %v254, %v252
  %v343 = vpack.c.b16 %v255, %v253
  %v344 = vpack.c.b16 %v258, %v256
  %v345 = vpack.c.b16 %v259, %v257
  %v346 = vpack.c.b16 %v262, %v260
  %v347 = vpack.c.b16 %v263, %v261
  %v348 = vpack.c.b16 %v266, %v264
  %v349 = vpack.c.b16 %v267, %v265
  %v350 = vpack.c.b16 %v270, %v268
  %v351 = vpack.c.b16 %v271, %v269
  %v352 = vpack.c.b16 %v274, %v272
  %v353 = vpack.c.b16 %v275, %v273
  %v354 = vpack.c.b16 %v278, %v276
  %v355 = vpack.c.b16 %v279, %v277
  %v356 = vpack.c.b16 %v282, %v280
  %v357 = vpack.c.b16 %v283, %v281
  %v358 = vpack.c.b16 %v286, %v284
  %v359 = vpack.c.b16 %v287, %v285
  %v360 = vpack.c.b16 %v290, %v288
  %v361 = vpack.c.b16 %v291, %v289
  %v362 = vpack.c.b16 %v294, %v292
  %v363 = vpack.c.b16 %v295, %v293
  %v364 = vpack.c.b16 %v298, %v296
  %v365 = vpack.c.b16 %v299, %v297
  %v366 = vpack.c.b16 %v302, %v300
  %v367 = vpack.c.b16 %v303, %v301
  %v433 = vlaneseq
  %v434 = vshrl.u32 %v433, 7
  %v435 = vsub.s32 0, %v434
  %v436 = vrot.slane %v111, %v435
  %v437 = vlaneseq
  %v438 = vshrl.u32 %v437, 7
  %v439 = vsub.s32 1, %v438
  %v440 = vrot.slane %v111, %v439
  %443 = vmatprep.subr.bf16.mxu0 %v305
  %444 = vmatpush1.bf16.msra.mxu0 %v304
  %445 = vmatprep.subr.bf16.mxu0 %v307
  %446 = vmatpush1.bf16.msra.mxu0 %v306
  %447 = vmatprep.subr.bf16.mxu0 %v309
  %448 = vmatpush1.bf16.msra.mxu0 %v308
  %449 = vmatprep.subr.bf16.mxu0 %v311
  %450 = vmatpush1.bf16.msra.mxu0 %v310
  %451 = vmatprep.subr.bf16.mxu0 %v313
  %452 = vmatpush1.bf16.msra.mxu0 %v312
  %453 = vmatprep.subr.bf16.mxu0 %v315
  %454 = vmatpush1.bf16.msra.mxu0 %v314
  %455 = vmatprep.subr.bf16.mxu0 %v317
  %456 = vmatpush1.bf16.msra.mxu0 %v316
  %457 = vmatprep.subr.bf16.mxu0 %v319
  %458 = vmatpush1.bf16.msra.mxu0 %v318
  %459 = vmatprep.subr.bf16.mxu0 %v321
  %460 = vmatpush1.bf16.msra.mxu0 %v320
  %461 = vmatprep.subr.bf16.mxu0 %v323
  %462 = vmatpush1.bf16.msra.mxu0 %v322
  %463 = vmatprep.subr.bf16.mxu0 %v325
  %464 = vmatpush1.bf16.msra.mxu0 %v324
  %465 = vmatprep.subr.bf16.mxu0 %v327
  %466 = vmatpush1.bf16.msra.mxu0 %v326
  %467 = vmatprep.subr.bf16.mxu0 %v329
  %468 = vmatpush1.bf16.msra.mxu0 %v328
  %469 = vmatprep.subr.bf16.mxu0 %v331
  %470 = vmatpush1.bf16.msra.mxu0 %v330
  %471 = vmatprep.subr.bf16.mxu0 %v333
  %472 = vmatpush1.bf16.msra.mxu0 %v332
  %473 = vmatprep.subr.bf16.mxu0 %v335
  %474 = vmatpush1.bf16.msra.mxu0 %v334
  %475 = vmatprep.mubr.bf16.mxu0 %v44
  %476 = vmatmul.mubr.bf16.gmra.mrb[0].mxu0 %v43
  %v477 = vpop.f32.mrb[0].mxu0
  %v478 = vadd.f32 %v436, %v477
  %v479 = vpop.f32.mrb[0].mxu0
  %v480 = vadd.f32 %v440, %v479
  %v481 = vpop.f32.mrb[0].mxu0
  %v482 = vpop.f32.mrb[0].mxu0
  %483 = vdwg.mxu0
  %484 = vmatprep.subr.bf16.mxu0 %v337
  %485 = vmatpush1.bf16.msra.mxu0 %v336
  %486 = vmatprep.subr.bf16.mxu0 %v339
  %487 = vmatpush1.bf16.msra.mxu0 %v338
  %488 = vmatprep.subr.bf16.mxu0 %v341
  %489 = vmatpush1.bf16.msra.mxu0 %v340
  %490 = vmatprep.subr.bf16.mxu0 %v343
  %491 = vmatpush1.bf16.msra.mxu0 %v342
  %492 = vmatprep.subr.bf16.mxu0 %v345
  %493 = vmatpush1.bf16.msra.mxu0 %v344
  %494 = vmatprep.subr.bf16.mxu0 %v347
  %495 = vmatpush1.bf16.msra.mxu0 %v346
  %496 = vmatprep.subr.bf16.mxu0 %v349
  %497 = vmatpush1.bf16.msra.mxu0 %v348
  %498 = vmatprep.subr.bf16.mxu0 %v351
  %499 = vmatpush1.bf16.msra.mxu0 %v350
  %500 = vmatprep.subr.bf16.mxu0 %v353
  %501 = vmatpush1.bf16.msra.mxu0 %v352
  %502 = vmatprep.subr.bf16.mxu0 %v355
  %503 = vmatpush1.bf16.msra.mxu0 %v354
  %504 = vmatprep.subr.bf16.mxu0 %v357
  %505 = vmatpush1.bf16.msra.mxu0 %v356
  %506 = vmatprep.subr.bf16.mxu0 %v359
  %507 = vmatpush1.bf16.msra.mxu0 %v358
  %508 = vmatprep.subr.bf16.mxu0 %v361
  %509 = vmatpush1.bf16.msra.mxu0 %v360
  %510 = vmatprep.subr.bf16.mxu0 %v363
  %511 = vmatpush1.bf16.msra.mxu0 %v362
  %512 = vmatprep.subr.bf16.mxu0 %v365
  %513 = vmatpush1.bf16.msra.mxu0 %v364
  %514 = vmatprep.subr.bf16.mxu0 %v367
  %515 = vmatpush1.bf16.msra.mxu0 %v366
  %516 = vmatprep.mubr.bf16.mxu0 %v46
  %517 = vmatmul.mubr.bf16.gmra.mrb[0].mxu0 %v45
  %v518 = vpop.f32.mrb[0].mxu0
  %v519 = vadd.f32 %v478, %v518
  %v520 = vpop.f32.mrb[0].mxu0
  %v521 = vadd.f32 %v480, %v520
  %v522 = vpop.f32.mrb[0].mxu0
  %v523 = vpop.f32.mrb[0].mxu0
  %524 = vdwg.mxu0
  %v525 = vmax.f32 %v519, 0.0
  %v526 = vmax.f32 %v521, 0.0
  %v527 = vpack.c.bf16 %v525, %v525
  %v528 = vpack.c.bf16 %v526, %v526
  %v529 = vld [vmem:[%s3] sm:$0xf]
  %v530 = vld [vmem:[%s3 + $0x4] sm:$0xf]
  %v531 = vld [vmem:[%s3 + $0x8] sm:$0xf]
  %v532 = vld [vmem:[%s3 + $0xc] sm:$0xf]
  %v533 = vld [vmem:[%s3 + $0x10] sm:$0xf]
  %v534 = vld [vmem:[%s3 + $0x14] sm:$0xf]
  %v535 = vld [vmem:[%s3 + $0x18] sm:$0xf]
  %v536 = vld [vmem:[%s3 + $0x1c] sm:$0xf]
  %v537 = vld [vmem:[%s3 + $0x20] sm:$0xf]
  %v538 = vld [vmem:[%s3 + $0x24] sm:$0xf]
  %v539 = vld [vmem:[%s3 + $0x28] sm:$0xf]
  %v540 = vld [vmem:[%s3 + $0x2c] sm:$0xf]
  %v541 = vld [vmem:[%s3 + $0x30] sm:$0xf]
  %v542 = vld [vmem:[%s3 + $0x34] sm:$0xf]
  %v543 = vld [vmem:[%s3 + $0x38] sm:$0xf]
  %v544 = vld [vmem:[%s3 + $0x3c] sm:$0xf]
  %v545 = vld [vmem:[%s3 + $0x40] sm:$0xf]
  %v546 = vld [vmem:[%s3 + $0x44] sm:$0xf]
  %v547 = vld [vmem:[%s3 + $0x48] sm:$0xf]
  %v548 = vld [vmem:[%s3 + $0x4c] sm:$0xf]
  %v549 = vld [vmem:[%s3 + $0x50] sm:$0xf]
  %v550 = vld [vmem:[%s3 + $0x54] sm:$0xf]
  %v551 = vld [vmem:[%s3 + $0x58] sm:$0xf]
  %v552 = vld [vmem:[%s3 + $0x5c] sm:$0xf]
  %v553 = vld [vmem:[%s3 + $0x60] sm:$0xf]
  %v554 = vld [vmem:[%s3 + $0x64] sm:$0xf]
  %v555 = vld [vmem:[%s3 + $0x68] sm:$0xf]
  %v556 = vld [vmem:[%s3 + $0x6c] sm:$0xf]
  %v557 = vld [vmem:[%s3 + $0x70] sm:$0xf]
  %v558 = vld [vmem:[%s3 + $0x74] sm:$0xf]
  %v559 = vld [vmem:[%s3 + $0x78] sm:$0xf]
  %v560 = vld [vmem:[%s3 + $0x7c] sm:$0xf]
  %v561 = vld [vmem:[%s4] sm:$0x1]
  %v594 = vunpack.c.l.b16 %v529
  %v595 = vunpack.c.l.b16 %v530
  %v596 = vunpack.c.l.b16 %v531
  %v597 = vunpack.c.l.b16 %v532
  %v598 = vunpack.c.l.b16 %v533
  %v599 = vunpack.c.l.b16 %v534
  %v600 = vunpack.c.l.b16 %v535
  %v601 = vunpack.c.l.b16 %v536
  %v602 = vunpack.c.l.b16 %v537
  %v603 = vunpack.c.l.b16 %v538
  %v604 = vunpack.c.l.b16 %v539
  %v605 = vunpack.c.l.b16 %v540
  %v606 = vunpack.c.l.b16 %v541
  %v607 = vunpack.c.l.b16 %v542
  %v608 = vunpack.c.l.b16 %v543
  %v609 = vunpack.c.l.b16 %v544
  %v610 = vunpack.c.l.b16 %v545
  %v611 = vunpack.c.l.b16 %v546
  %v612 = vunpack.c.l.b16 %v547
  %v613 = vunpack.c.l.b16 %v548
  %v614 = vunpack.c.l.b16 %v549
  %v615 = vunpack.c.l.b16 %v550
  %v616 = vunpack.c.l.b16 %v551
  %v617 = vunpack.c.l.b16 %v552
  %v618 = vunpack.c.l.b16 %v553
  %v619 = vunpack.c.l.b16 %v554
  %v620 = vunpack.c.l.b16 %v555
  %v621 = vunpack.c.l.b16 %v556
  %v622 = vunpack.c.l.b16 %v557
  %v623 = vunpack.c.l.b16 %v558
  %v624 = vunpack.c.l.b16 %v559
  %v625 = vunpack.c.l.b16 %v560
  %v626 = vpack.c.b16 %v595, %v594
  %v627 = vpack.c.b16 %v597, %v596
  %v628 = vpack.c.b16 %v599, %v598
  %v629 = vpack.c.b16 %v601, %v600
  %v630 = vpack.c.b16 %v603, %v602
  %v631 = vpack.c.b16 %v605, %v604
  %v632 = vpack.c.b16 %v607, %v606
  %v633 = vpack.c.b16 %v609, %v608
  %v634 = vpack.c.b16 %v611, %v610
  %v635 = vpack.c.b16 %v613, %v612
  %v636 = vpack.c.b16 %v615, %v614
  %v637 = vpack.c.b16 %v617, %v616
  %v638 = vpack.c.b16 %v619, %v618
  %v639 = vpack.c.b16 %v621, %v620
  %v640 = vpack.c.b16 %v623, %v622
  %v641 = vpack.c.b16 %v625, %v624
  %658 = vmatprep.subr.bf16.mxu0 0
  %659 = vmatpush1.bf16.msra.mxu0 %v626
  %660 = vmatprep.subr.bf16.mxu0 0
  %661 = vmatpush1.bf16.msra.mxu0 %v627
  %662 = vmatprep.subr.bf16.mxu0 0
  %663 = vmatpush1.bf16.msra.mxu0 %v628
  %664 = vmatprep.subr.bf16.mxu0 0
  %665 = vmatpush1.bf16.msra.mxu0 %v629
  %666 = vmatprep.subr.bf16.mxu0 0
  %667 = vmatpush1.bf16.msra.mxu0 %v630
  %668 = vmatprep.subr.bf16.mxu0 0
  %669 = vmatpush1.bf16.msra.mxu0 %v631
  %670 = vmatprep.subr.bf16.mxu0 0
  %671 = vmatpush1.bf16.msra.mxu0 %v632
  %672 = vmatprep.subr.bf16.mxu0 0
  %673 = vmatpush1.bf16.msra.mxu0 %v633
  %674 = vmatprep.subr.bf16.mxu0 0
  %675 = vmatpush1.bf16.msra.mxu0 %v634
  %676 = vmatprep.subr.bf16.mxu0 0
  %677 = vmatpush1.bf16.msra.mxu0 %v635
  %678 = vmatprep.subr.bf16.mxu0 0
  %679 = vmatpush1.bf16.msra.mxu0 %v636
  %680 = vmatprep.subr.bf16.mxu0 0
  %681 = vmatpush1.bf16.msra.mxu0 %v637
  %682 = vmatprep.subr.bf16.mxu0 0
  %683 = vmatpush1.bf16.msra.mxu0 %v638
  %684 = vmatprep.subr.bf16.mxu0 0
  %685 = vmatpush1.bf16.msra.mxu0 %v639
  %686 = vmatprep.subr.bf16.mxu0 0
  %687 = vmatpush1.bf16.msra.mxu0 %v640
  %688 = vmatprep.subr.bf16.mxu0 0
  %689 = vmatpush1.bf16.msra.mxu0 %v641
  %690 = vmatprep.mubr.bf16.mxu0 %v528
  %691 = vmatmul.mubr.bf16.gmra.mrb[0].mxu0 %v527
  %v692 = vpop.f32.mrb[0].mxu0
  %v693 = vadd.f32 %v561, %v692
  %v694 = vpop.f32.mrb[0].mxu0
  %v695 = vpop.f32.mrb[0].mxu0
  %v696 = vpop.f32.mrb[0].mxu0
  %697 = vdwg.mxu0
  %698 = vst [vmem:[%s5] sm:$0x1] %v693
  // Predicated region
  $region22: #{encode.1} parent=0 // pred_check
    _
  $region23: #{encode.1} parent=0 // pred_check_branch
    %700 = sbr.rel (0) target = $region25
  $region24: #{encode.1} parent=0 // pred_region
    _
  $region25: #{encode.1} parent=0 // pred_fallthru
    _
  // Predicated region
  $region26: #{encode.1} parent=0 // pred_check
    _
  $region27: #{encode.1} parent=0 // pred_check_branch
    %702 = sbr.rel (0) target = $region29
  $region28: #{encode.1} parent=0 // pred_region
    _
  $region29: #{encode.1} parent=0 // pred_fallthru
    _

</llo_original>
